<compile_context>
chip_gen: v5e
topology: v5e:2x2
jax: 0.10.0
libtpu: 0.0.40
codegen_flags: <defaults>
</compile_context>

<pallas_src>
import functools

import jax
import jax.numpy as jnp
from jax import lax
from jax.experimental import pallas as pl
from jax.experimental.pallas import tpu as pltpu


NEG_SLOPE = 0.2


def _leaky(v):
    # Valid for 0 < slope < 1: max(v, slope*v) == leaky_relu(v).
    return jnp.maximum(v, NEG_SLOPE * v)


def bottleneck_kernel(x_ref, w1_ref, w2_ref, w3_ref, mask_ref, o_ref, *, H, W):
    """Fused Bottleneck forward for one batch element, (C, H*W) layout.

    x_ref    : (1, Cin, HW)  VMEM f32  -- input image, channels on sublanes
    w1_ref   : (P, Cin)      bf16      -- conv1 1x1 weight (out, in)
    w2_ref   : (P, 9P)       bf16      -- conv2 3x3 weight, taps stacked on K
    w3_ref   : (Cout, P)     bf16      -- conv3 1x1 weight (out, in)
    mask_ref : (9, 1, HW)    f32       -- per-tap 0/1 border masks
    o_ref    : (1, Cout, HW) VMEM f32  -- output, lane-dense (HW on lanes)
    """
    P = w1_ref.shape[0]
    HW = H * W

    x = x_ref[0]                                             # (Cin, HW) f32

    # ---- conv1 (1x1) + LeakyReLU : (P, HW) = (P, Cin) @ (Cin, HW) ----
    out1 = _leaky(jnp.dot(w1_ref[...], x.astype(jnp.bfloat16),
                          preferred_element_type=jnp.float32))   # (P, HW) f32

    # ---- conv2 (3x3, pad=1, stride=1) + LeakyReLU ----
    # Each tap (dy, dx) is a circular lane-roll of the flattened H*W axis by
    # -(dy*W + dx) (XLU slot), zeroed at the image border by a precomputed
    # 0/1 mask (one VPU multiply).  All 9 taps are stacked along the
    # contraction axis and consumed by ONE K = 9P MXU matmul.
    taps = []
    t = 0
    for dy in (-1, 0, 1):
        for dx in (-1, 0, 1):
            s = dy * W + dx
            if s == 0:
                tap = out1
            else:
                tap = pltpu.roll(out1, shift=(-s) % HW, axis=1) * mask_ref[t]
            taps.append(tap.astype(jnp.bfloat16))
            t += 1
    stacked = jnp.concatenate(taps, axis=0)                  # (9P, HW) bf16
    out2 = _leaky(jnp.dot(w2_ref[...], stacked,
                          preferred_element_type=jnp.float32))   # (P, HW) f32

    # ---- conv3 (1x1) + residual + LeakyReLU ----
    out3 = jnp.dot(w3_ref[...], out2.astype(jnp.bfloat16),
                   preferred_element_type=jnp.float32)       # (Cout, HW) f32
    # Residual re-read here (short live range); Cin == Cout by construction.
    o_ref[0] = _leaky(out3 + x_ref[0]).astype(o_ref.dtype)


@jax.jit
def bottleneck_forward(x_nchw, w1, w2, w3):
    """x_nchw: (N, Cin, H, W) NCHW.

    Weights in PyTorch layout:
      w1: (P, Cin, 1, 1), w2: (P, P, 3, 3), w3: (Cout, P, 1, 1).
    Returns NCHW output of shape (N, Cout, H, W).
    """
    N, Cin, H, W = x_nchw.shape
    P = w1.shape[0]
    Cout = w3.shape[0]
    assert Cout == Cin, "residual add requires inplanes == planes * expansion"
    HW = H * W

    # Free reshape: NCHW is already channel-major, spatial becomes lane axis.
    x_flat = x_nchw.reshape(N, Cin, HW)

    # Weight preprocessing (tiny tensors, done once under jit); bf16 MXU
    # operands are prepared here so the kernel never re-casts weights.
    w1_mat = w1.reshape(P, Cin).astype(jnp.bfloat16)               # (out, in)
    # (out, in, kh, kw) -> (tap, out, in) -> (out, 9*in) with tap t = kh*3+kw
    # occupying columns [t*P, (t+1)*P), matching the stacked-tap row order.
    w2_taps = jnp.transpose(w2, (2, 3, 0, 1)).reshape(9, P, P)
    w2_blk = jnp.transpose(w2_taps, (1, 0, 2)).reshape(P, 9 * P)
    w2_blk = w2_blk.astype(jnp.bfloat16)
    w3_mat = w3.reshape(Cout, P).astype(jnp.bfloat16)              # (out, in)

    # Per-tap border masks, precomputed once (HW*4B each; negligible VMEM).
    lane = jnp.arange(HW, dtype=jnp.int32)
    row = lane // W
    col = lane % W
    masks = []
    for dy in (-1, 0, 1):
        for dx in (-1, 0, 1):
            valid = ((row + dy >= 0) & (row + dy < H) &
                     (col + dx >= 0) & (col + dx < W))
            masks.append(valid.astype(jnp.float32))
    masks = jnp.stack(masks, axis=0).reshape(9, 1, HW)

    kernel = functools.partial(bottleneck_kernel, H=H, W=W)

    out_flat = pl.pallas_call(
        kernel,
        out_shape=jax.ShapeDtypeStruct((N, Cout, HW), x_nchw.dtype),
        grid_spec=pltpu.PrefetchScalarGridSpec(
            num_scalar_prefetch=0,
            grid=(N,),
            in_specs=[
                pl.BlockSpec((1, Cin, HW), lambda n: (n, 0, 0)),
                pl.BlockSpec((P, Cin), lambda n: (0, 0)),
                pl.BlockSpec((P, 9 * P), lambda n: (0, 0)),
                pl.BlockSpec((Cout, P), lambda n: (0, 0)),
                pl.BlockSpec((9, 1, HW), lambda n: (0, 0, 0)),
            ],
            out_specs=pl.BlockSpec((1, Cout, HW), lambda n: (n, 0, 0)),
        ),
        compiler_params=pltpu.CompilerParams(
            dimension_semantics=("parallel",),
            vmem_limit_bytes=32 * 1024 * 1024,
        ),
    )(x_flat, w1_mat, w2_blk, w3_mat, masks)

    return out_flat.reshape(N, Cout, H, W)


def reference_forward(x, w1, w2, w3):
    """Pure-JAX f32 reference in NCHW/OIHW (matches nn.Conv2d exactly)."""
    def leaky(v):
        return jnp.where(v > 0, v, NEG_SLOPE * v)
    dn = ("NCHW", "OIHW", "NCHW")
    o = lax.conv_general_dilated(x, w1, (1, 1), "VALID", dimension_numbers=dn)
    o = leaky(o)
    o = lax.conv_general_dilated(o, w2, (1, 1), ((1, 1), (1, 1)),
                                 dimension_numbers=dn)
    o = leaky(o)
    o = lax.conv_general_dilated(o, w3, (1, 1), "VALID", dimension_numbers=dn)
    o = leaky(o + x)
    return o


if __name__ == "__main__":
    # Small shapes: Bottleneck(inplanes=16, planes=4) -> out channels 16.
    N, Cin, H, W = 2, 16, 16, 16
    planes = 4
    Cout = planes * 4          # expansion = 4; == Cin so downsample=None valid

    key = jax.random.PRNGKey(0)
    kx, k1, k2, k3 = jax.random.split(key, 4)

    x = jax.random.normal(kx, (N, Cin, H, W), dtype=jnp.float32)
    # Deterministic synthetic weights in PyTorch OIHW layout (no checkpoint).
    w1 = jax.random.normal(k1, (planes, Cin, 1, 1), dtype=jnp.float32) * 0.1
    w2 = jax.random.normal(k2, (planes, planes, 3, 3), dtype=jnp.float32) * 0.1
    w3 = jax.random.normal(k3, (Cout, planes, 1, 1), dtype=jnp.float32) * 0.1

    out = bottleneck_forward(x, w1, w2, w3)
    out = jax.block_until_ready(out)

    ref = reference_forward(x, w1, w2, w3)
    assert out.shape == (N, Cout, H, W)
    # Tolerance loosened vs the pure-f32 version: matmul operands are bf16
    # (accumulation in f32), as recommended by the perf review.
    assert jnp.allclose(out, ref, atol=2e-2, rtol=2e-2), "mismatch vs reference"

    print("KERNEL_OK")
</pallas_src>

<mosaic_0001>
module attributes {stable_mosaic.version = 11 : i64} {
  func.func @bottleneck_kernel(%arg0: i32, %arg1: memref<1x16x256xf32, #tpu.memory_space<vmem>>, %arg2: memref<4x16xbf16, #tpu.memory_space<vmem>>, %arg3: memref<4x36xbf16, #tpu.memory_space<vmem>>, %arg4: memref<16x4xbf16, #tpu.memory_space<vmem>>, %arg5: memref<9x1x256xf32, #tpu.memory_space<vmem>>, %arg6: memref<1x16x256xf32, #tpu.memory_space<vmem>>) attributes {dimension_semantics = [#tpu.dimension_semantics<parallel>], iteration_bounds = array<i64: 2>, scalar_prefetch = 0 : i64, scratch_operands = 0 : i64, tpu.core_type = #tpu.core_type<tc>, window_params = [{transform_indices = @transform_0, window_bounds = array<i64: 1, 16, 256>}, {pipeline_mode = #tpu.pipeline_mode<synchronous>, transform_indices = @transform_1, window_bounds = array<i64: 4, 16>}, {pipeline_mode = #tpu.pipeline_mode<synchronous>, transform_indices = @transform_2, window_bounds = array<i64: 4, 36>}, {pipeline_mode = #tpu.pipeline_mode<synchronous>, transform_indices = @transform_3, window_bounds = array<i64: 16, 4>}, {pipeline_mode = #tpu.pipeline_mode<synchronous>, transform_indices = @transform_4, window_bounds = array<i64: 9, 1, 256>}, {transform_indices = @transform_5, window_bounds = array<i64: 1, 16, 256>}]} {
    %c0 = arith.constant 0 : index
    %c0_0 = arith.constant 0 : index
    %c0_1 = arith.constant 0 : index
    %0 = vector.load %arg1[%c0, %c0_0, %c0_1] : memref<1x16x256xf32, #tpu.memory_space<vmem>>, vector<1x16x256xf32>
    %1 = vector.shape_cast %0 : vector<1x16x256xf32> to vector<16x256xf32>
    %c0_2 = arith.constant 0 : index
    %c0_3 = arith.constant 0 : index
    %2 = vector.load %arg2[%c0_2, %c0_3] : memref<4x16xbf16, #tpu.memory_space<vmem>>, vector<4x16xbf16>
    %3 = arith.truncf %1 : vector<16x256xf32> to vector<16x256xbf16>
    %cst = arith.constant dense<0.000000e+00> : vector<4x256xf32>
    %4 = tpu.matmul %2, %3, %cst {dimension_numbers = #tpu.dot_dimension_numbers<[1], [0], [0], [1], [0, 0, 1, 1], [], []>} : vector<4x16xbf16>, vector<16x256xbf16>, vector<4x256xf32> -> vector<4x256xf32>
    %cst_4 = arith.constant 2.000000e-01 : f32
    %5 = vector.broadcast %cst_4 : f32 to vector<4x256xf32>
    %6 = arith.mulf %5, %4 : vector<4x256xf32>
    %7 = arith.maximumf %4, %6 : vector<4x256xf32>
    %c17_i32 = arith.constant 17 : i32
    %8 = tpu.dynamic_rotate %7 by %c17_i32 dim 1 : vector<4x256xf32>, i32 -> vector<4x256xf32>
    %c0_5 = arith.constant 0 : index
    %c0_6 = arith.constant 0 : index
    %c0_7 = arith.constant 0 : index
    %9 = vector.load %arg5[%c0_5, %c0_6, %c0_7] : memref<9x1x256xf32, #tpu.memory_space<vmem>>, vector<1x1x256xf32>
    %10 = vector.shape_cast %9 : vector<1x1x256xf32> to vector<1x256xf32>
    %11 = vector.broadcast %10 : vector<1x256xf32> to vector<4x256xf32>
    %12 = arith.mulf %8, %11 : vector<4x256xf32>
    %13 = arith.truncf %12 : vector<4x256xf32> to vector<4x256xbf16>
    %c16_i32 = arith.constant 16 : i32
    %14 = tpu.dynamic_rotate %7 by %c16_i32 dim 1 : vector<4x256xf32>, i32 -> vector<4x256xf32>
    %c1 = arith.constant 1 : index
    %c0_8 = arith.constant 0 : index
    %c0_9 = arith.constant 0 : index
    %15 = vector.load %arg5[%c1, %c0_8, %c0_9] : memref<9x1x256xf32, #tpu.memory_space<vmem>>, vector<1x1x256xf32>
    %16 = vector.shape_cast %15 : vector<1x1x256xf32> to vector<1x256xf32>
    %17 = vector.broadcast %16 : vector<1x256xf32> to vector<4x256xf32>
    %18 = arith.mulf %14, %17 : vector<4x256xf32>
    %19 = arith.truncf %18 : vector<4x256xf32> to vector<4x256xbf16>
    %c15_i32 = arith.constant 15 : i32
    %20 = tpu.dynamic_rotate %7 by %c15_i32 dim 1 : vector<4x256xf32>, i32 -> vector<4x256xf32>
    %c2 = arith.constant 2 : index
    %c0_10 = arith.constant 0 : index
    %c0_11 = arith.constant 0 : index
    %21 = vector.load %arg5[%c2, %c0_10, %c0_11] : memref<9x1x256xf32, #tpu.memory_space<vmem>>, vector<1x1x256xf32>
    %22 = vector.shape_cast %21 : vector<1x1x256xf32> to vector<1x256xf32>
    %23 = vector.broadcast %22 : vector<1x256xf32> to vector<4x256xf32>
    %24 = arith.mulf %20, %23 : vector<4x256xf32>
    %25 = arith.truncf %24 : vector<4x256xf32> to vector<4x256xbf16>
    %c1_i32 = arith.constant 1 : i32
    %26 = tpu.dynamic_rotate %7 by %c1_i32 dim 1 : vector<4x256xf32>, i32 -> vector<4x256xf32>
    %c3 = arith.constant 3 : index
    %c0_12 = arith.constant 0 : index
    %c0_13 = arith.constant 0 : index
    %27 = vector.load %arg5[%c3, %c0_12, %c0_13] : memref<9x1x256xf32, #tpu.memory_space<vmem>>, vector<1x1x256xf32>
    %28 = vector.shape_cast %27 : vector<1x1x256xf32> to vector<1x256xf32>
    %29 = vector.broadcast %28 : vector<1x256xf32> to vector<4x256xf32>
    %30 = arith.mulf %26, %29 : vector<4x256xf32>
    %31 = arith.truncf %30 : vector<4x256xf32> to vector<4x256xbf16>
    %32 = arith.truncf %7 : vector<4x256xf32> to vector<4x256xbf16>
    %c255_i32 = arith.constant 255 : i32
    %33 = tpu.dynamic_rotate %7 by %c255_i32 dim 1 : vector<4x256xf32>, i32 -> vector<4x256xf32>
    %c5 = arith.constant 5 : index
    %c0_14 = arith.constant 0 : index
    %c0_15 = arith.constant 0 : index
    %34 = vector.load %arg5[%c5, %c0_14, %c0_15] : memref<9x1x256xf32, #tpu.memory_space<vmem>>, vector<1x1x256xf32>
    %35 = vector.shape_cast %34 : vector<1x1x256xf32> to vector<1x256xf32>
    %36 = vector.broadcast %35 : vector<1x256xf32> to vector<4x256xf32>
    %37 = arith.mulf %33, %36 : vector<4x256xf32>
    %38 = arith.truncf %37 : vector<4x256xf32> to vector<4x256xbf16>
    %c241_i32 = arith.constant 241 : i32
    %39 = tpu.dynamic_rotate %7 by %c241_i32 dim 1 : vector<4x256xf32>, i32 -> vector<4x256xf32>
    %c6 = arith.constant 6 : index
    %c0_16 = arith.constant 0 : index
    %c0_17 = arith.constant 0 : index
    %40 = vector.load %arg5[%c6, %c0_16, %c0_17] : memref<9x1x256xf32, #tpu.memory_space<vmem>>, vector<1x1x256xf32>
    %41 = vector.shape_cast %40 : vector<1x1x256xf32> to vector<1x256xf32>
    %42 = vector.broadcast %41 : vector<1x256xf32> to vector<4x256xf32>
    %43 = arith.mulf %39, %42 : vector<4x256xf32>
    %44 = arith.truncf %43 : vector<4x256xf32> to vector<4x256xbf16>
    %c240_i32 = arith.constant 240 : i32
    %45 = tpu.dynamic_rotate %7 by %c240_i32 dim 1 : vector<4x256xf32>, i32 -> vector<4x256xf32>
    %c7 = arith.constant 7 : index
    %c0_18 = arith.constant 0 : index
    %c0_19 = arith.constant 0 : index
    %46 = vector.load %arg5[%c7, %c0_18, %c0_19] : memref<9x1x256xf32, #tpu.memory_space<vmem>>, vector<1x1x256xf32>
    %47 = vector.shape_cast %46 : vector<1x1x256xf32> to vector<1x256xf32>
    %48 = vector.broadcast %47 : vector<1x256xf32> to vector<4x256xf32>
    %49 = arith.mulf %45, %48 : vector<4x256xf32>
    %50 = arith.truncf %49 : vector<4x256xf32> to vector<4x256xbf16>
    %c239_i32 = arith.constant 239 : i32
    %51 = tpu.dynamic_rotate %7 by %c239_i32 dim 1 : vector<4x256xf32>, i32 -> vector<4x256xf32>
    %c8 = arith.constant 8 : index
    %c0_20 = arith.constant 0 : index
    %c0_21 = arith.constant 0 : index
    %52 = vector.load %arg5[%c8, %c0_20, %c0_21] : memref<9x1x256xf32, #tpu.memory_space<vmem>>, vector<1x1x256xf32>
    %53 = vector.shape_cast %52 : vector<1x1x256xf32> to vector<1x256xf32>
    %54 = vector.broadcast %53 : vector<1x256xf32> to vector<4x256xf32>
    %55 = arith.mulf %51, %54 : vector<4x256xf32>
    %56 = arith.truncf %55 : vector<4x256xf32> to vector<4x256xbf16>
    %57 = tpu.concatenate %13, %19, %25, %31, %32, %38, %44, %50, %56 in 0 : vector<4x256xbf16>, vector<4x256xbf16>, vector<4x256xbf16>, vector<4x256xbf16>, vector<4x256xbf16>, vector<4x256xbf16>, vector<4x256xbf16>, vector<4x256xbf16>, vector<4x256xbf16> -> vector<36x256xbf16>
    %c0_22 = arith.constant 0 : index
    %c0_23 = arith.constant 0 : index
    %58 = vector.load %arg3[%c0_22, %c0_23] : memref<4x36xbf16, #tpu.memory_space<vmem>>, vector<4x36xbf16>
    %cst_24 = arith.constant dense<0.000000e+00> : vector<4x256xf32>
    %59 = tpu.matmul %58, %57, %cst_24 {dimension_numbers = #tpu.dot_dimension_numbers<[1], [0], [0], [1], [0, 0, 1, 1], [], []>} : vector<4x36xbf16>, vector<36x256xbf16>, vector<4x256xf32> -> vector<4x256xf32>
    %cst_25 = arith.constant 2.000000e-01 : f32
    %60 = vector.broadcast %cst_25 : f32 to vector<4x256xf32>
    %61 = arith.mulf %60, %59 : vector<4x256xf32>
    %62 = arith.maximumf %59, %61 : vector<4x256xf32>
    %c0_26 = arith.constant 0 : index
    %c0_27 = arith.constant 0 : index
    %63 = vector.load %arg4[%c0_26, %c0_27] : memref<16x4xbf16, #tpu.memory_space<vmem>>, vector<16x4xbf16>
    %64 = arith.truncf %62 : vector<4x256xf32> to vector<4x256xbf16>
    %cst_28 = arith.constant dense<0.000000e+00> : vector<16x256xf32>
    %65 = tpu.matmul %63, %64, %cst_28 {dimension_numbers = #tpu.dot_dimension_numbers<[1], [0], [0], [1], [0, 0, 1, 1], [], []>} : vector<16x4xbf16>, vector<4x256xbf16>, vector<16x256xf32> -> vector<16x256xf32>
    %c0_29 = arith.constant 0 : index
    %c0_30 = arith.constant 0 : index
    %c0_31 = arith.constant 0 : index
    %66 = vector.load %arg1[%c0_29, %c0_30, %c0_31] : memref<1x16x256xf32, #tpu.memory_space<vmem>>, vector<1x16x256xf32>
    %67 = vector.shape_cast %66 : vector<1x16x256xf32> to vector<16x256xf32>
    %68 = arith.addf %65, %67 : vector<16x256xf32>
    %cst_32 = arith.constant 2.000000e-01 : f32
    %69 = vector.broadcast %cst_32 : f32 to vector<16x256xf32>
    %70 = arith.mulf %69, %68 : vector<16x256xf32>
    %71 = arith.maximumf %68, %70 : vector<16x256xf32>
    %c0_33 = arith.constant 0 : index
    %c0_34 = arith.constant 0 : index
    %c0_35 = arith.constant 0 : index
    %72 = vector.load %arg6[%c0_33, %c0_34, %c0_35] : memref<1x16x256xf32, #tpu.memory_space<vmem>>, vector<1x16x256xf32>
    %73 = vector.shape_cast %72 : vector<1x16x256xf32> to vector<16x256xf32>
    %74 = vector.shape_cast %71 : vector<16x256xf32> to vector<1x16x256xf32>
    tpu.vector_store %arg6[%c0_33, %c0_34, %c0_35], %74 {strides = array<i32>} : memref<1x16x256xf32, #tpu.memory_space<vmem>>, vector<1x16x256xf32>,
    return
  }
  func.func @transform_0(%arg0: i32) -> (i32, i32, i32) {
    %c0_i32 = arith.constant 0 : i32
    %c0_i32_0 = arith.constant 0 : i32
    %c0_i32_1 = arith.constant 0 : i32
    return %arg0, %c0_i32, %c0_i32_0 : i32, i32, i32
  }
  func.func @transform_1(%arg0: i32) -> (i32, i32) {
    %c0_i32 = arith.constant 0 : i32
    %c0_i32_0 = arith.constant 0 : i32
    %c0_i32_1 = arith.constant 0 : i32
    return %c0_i32, %c0_i32_0 : i32, i32
  }
  func.func @transform_2(%arg0: i32) -> (i32, i32) {
    %c0_i32 = arith.constant 0 : i32
    %c0_i32_0 = arith.constant 0 : i32
    %c0_i32_1 = arith.constant 0 : i32
    return %c0_i32, %c0_i32_0 : i32, i32
  }
  func.func @transform_3(%arg0: i32) -> (i32, i32) {
    %c0_i32 = arith.constant 0 : i32
    %c0_i32_0 = arith.constant 0 : i32
    %c0_i32_1 = arith.constant 0 : i32
    return %c0_i32, %c0_i32_0 : i32, i32
  }
  func.func @transform_4(%arg0: i32) -> (i32, i32, i32) {
    %c0_i32 = arith.constant 0 : i32
    %c0_i32_0 = arith.constant 0 : i32
    %c0_i32_1 = arith.constant 0 : i32
    %c0_i32_2 = arith.constant 0 : i32
    return %c0_i32, %c0_i32_0, %c0_i32_1 : i32, i32, i32
  }
  func.func @transform_5(%arg0: i32) -> (i32, i32, i32) {
    %c0_i32 = arith.constant 0 : i32
    %c0_i32_0 = arith.constant 0 : i32
    %c0_i32_1 = arith.constant 0 : i32
    return %arg0, %c0_i32, %c0_i32_0 : i32, i32, i32
  }
}

</mosaic_0001>

<llo_original>
// kernel: bottleneck_forward.1
$region0: #{bottleneck_forward.1}
  #allocation0 [shape = 'u32[]', space=smem, size = 0x4, offset = 0x4, fixed_abs, tag = 'smem constant byte address 0x4 - core index']
  #allocation1 [shape = 'u32[72,128]{1,0:T(1,128)}', space=vmem, size = 0x9000, scoped, tag = 'internal scratch']
  %s0 = inlined_call_operand.vmem [shape: f32[2,16,256], index: 0, kind: input, shape index: {}]
  %s1 = inlined_call_operand.vmem [shape: bf16[4,16], index: 1, kind: input, shape index: {}]
  %s2 = inlined_call_operand.vmem [shape: bf16[4,36], index: 2, kind: input, shape index: {}]
  %s3 = inlined_call_operand.vmem [shape: bf16[16,4], index: 3, kind: input, shape index: {}]
  %s4 = inlined_call_operand.vmem [shape: f32[9,1,256], index: 4, kind: input, shape index: {}]
  %s5 = inlined_call_operand.vmem [shape: f32[2,16,256], index: 5, kind: output, shape index: {}]
  %s6 = sld [smem:[#allocation0]]
  $region53: #{bottleneck_forward.1} parent=0
    _
  %s8 = ssub.s32 1, %s6
  %s9 = scalar_select 0, %s8, %s6
  loop: start=0, step=1, limit=4
  $region2: #{bottleneck_forward.1} parent=0 // loop_pre_header
    _
  $region3: #{bottleneck_forward.1} parent=0 // loop_header
    %s11 = sphi 0, %s15
    %p12 = scmp.ge.s32.totalorder %s11, 4
    %s21 = sphi 0, %s23
    %s24 = sphi 0, %s21
    %s25 = sphi 0, %s24
    %s41 = sphi 0, %s25
    %s45 = sphi 0, %s45
    %s47 = sphi 0, %s45
    %s48 = sphi 0, %s47
    %s62 = sphi 0, %s48
    %s66 = sphi 0, %s66
    %s68 = sphi 0, %s66
    %s69 = sphi 0, %s68
    %s83 = sphi 0, %s69
    %s87 = sphi 0, %s87
    %s89 = sphi 0, %s87
    %s90 = sphi 0, %s89
    %s104 = sphi 0, %s90
    %s108 = sphi 0, %s108
    %s110 = sphi 0, %s108
    %s111 = sphi 0, %s110
    %s125 = sphi 0, %s111
    %s131 = sphi 0, %s133
    %s134 = sphi 0, %s131
    %s135 = sphi 0, %s134
    %s151 = sphi 0, %s135
  $region4: #{bottleneck_forward.1} parent=0 // loop_header_branch
    %14 = sbr.rel (%p12) target = $region8
  $region5: #{bottleneck_forward.1} parent=0 // loop_body
    %s16 = ssub.s32 %s11, 1
    %s17 = ssub.s32 %s11, 2
    %s18 = sadd.s32 %s11, 1
    %s19 = ssub.s32 %s11, %s18
    %p20 = scmp.eq.s32.totalorder %s19, 0
    %s22 = sadd.s32 %s21, 1
    %s23 = scalar_select %p20, %s21, %s22
    %p26 = pneg %p20
    %p27 = scmp.eq.s32.totalorder %s11, 1
    %p28 = por %p26, %p27
    %p29 = scmp.ne.s32.totalorder %s21, %s24
    %p30 = scmp.eq.s32.totalorder %s11, 0
    %p31 = por %p29, %p30
    %p32 = scmp.ne.s32.totalorder %s21, %s24
    %p33 = scmp.eq.s32.totalorder %s16, 1
    %p34 = por %p32, %p33
    %p35 = scmp.ne.s32.totalorder %s24, %s25
    %p36 = scmp.eq.s32.totalorder %s16, 0
    %p37 = por %p35, %p36
    %p38 = scmp.ne.s32.totalorder %s24, %s25
    %p39 = scmp.eq.s32.totalorder %s17, 1
    %p40 = por %p38, %p39
    %p42 = scmp.ne.s32.totalorder %s25, %s41
    %p43 = scmp.eq.s32.totalorder %s17, 0
    %p44 = por %p42, %p43
    %s46 = sadd.s32 %s45, 1
    %p49 = scmp.eq.s32.totalorder %s11, 1
    %p50 = scmp.ne.s32.totalorder %s45, %s47
    %p51 = scmp.eq.s32.totalorder %s11, 0
    %p52 = por %p50, %p51
    %p53 = scmp.ne.s32.totalorder %s45, %s47
    %p54 = scmp.eq.s32.totalorder %s16, 1
    %p55 = por %p53, %p54
    %p56 = scmp.ne.s32.totalorder %s47, %s48
    %p57 = scmp.eq.s32.totalorder %s16, 0
    %p58 = por %p56, %p57
    %p59 = scmp.ne.s32.totalorder %s47, %s48
    %p60 = scmp.eq.s32.totalorder %s17, 1
    %p61 = por %p59, %p60
    %p63 = scmp.ne.s32.totalorder %s48, %s62
    %p64 = scmp.eq.s32.totalorder %s17, 0
    %p65 = por %p63, %p64
    %s67 = sadd.s32 %s66, 1
    %p70 = scmp.eq.s32.totalorder %s11, 1
    %p71 = scmp.ne.s32.totalorder %s66, %s68
    %p72 = scmp.eq.s32.totalorder %s11, 0
    %p73 = por %p71, %p72
    %p74 = scmp.ne.s32.totalorder %s66, %s68
    %p75 = scmp.eq.s32.totalorder %s16, 1
    %p76 = por %p74, %p75
    %p77 = scmp.ne.s32.totalorder %s68, %s69
    %p78 = scmp.eq.s32.totalorder %s16, 0
    %p79 = por %p77, %p78
    %p80 = scmp.ne.s32.totalorder %s68, %s69
    %p81 = scmp.eq.s32.totalorder %s17, 1
    %p82 = por %p80, %p81
    %p84 = scmp.ne.s32.totalorder %s69, %s83
    %p85 = scmp.eq.s32.totalorder %s17, 0
    %p86 = por %p84, %p85
    %s88 = sadd.s32 %s87, 1
    %p91 = scmp.eq.s32.totalorder %s11, 1
    %p92 = scmp.ne.s32.totalorder %s87, %s89
    %p93 = scmp.eq.s32.totalorder %s11, 0
    %p94 = por %p92, %p93
    %p95 = scmp.ne.s32.totalorder %s87, %s89
    %p96 = scmp.eq.s32.totalorder %s16, 1
    %p97 = por %p95, %p96
    %p98 = scmp.ne.s32.totalorder %s89, %s90
    %p99 = scmp.eq.s32.totalorder %s16, 0
    %p100 = por %p98, %p99
    %p101 = scmp.ne.s32.totalorder %s89, %s90
    %p102 = scmp.eq.s32.totalorder %s17, 1
    %p103 = por %p101, %p102
    %p105 = scmp.ne.s32.totalorder %s90, %s104
    %p106 = scmp.eq.s32.totalorder %s17, 0
    %p107 = por %p105, %p106
    %s109 = sadd.s32 %s108, 1
    %p112 = scmp.eq.s32.totalorder %s11, 1
    %p113 = scmp.ne.s32.totalorder %s108, %s110
    %p114 = scmp.eq.s32.totalorder %s11, 0
    %p115 = por %p113, %p114
    %p116 = scmp.ne.s32.totalorder %s108, %s110
    %p117 = scmp.eq.s32.totalorder %s16, 1
    %p118 = por %p116, %p117
    %p119 = scmp.ne.s32.totalorder %s110, %s111
    %p120 = scmp.eq.s32.totalorder %s16, 0
    %p121 = por %p119, %p120
    %p122 = scmp.ne.s32.totalorder %s110, %s111
    %p123 = scmp.eq.s32.totalorder %s17, 1
    %p124 = por %p122, %p123
    %p126 = scmp.ne.s32.totalorder %s111, %s125
    %p127 = scmp.eq.s32.totalorder %s17, 0
    %p128 = por %p126, %p127
    %s129 = ssub.s32 %s11, %s18
    %p130 = scmp.eq.s32.totalorder %s129, 0
    %s132 = sadd.s32 %s131, 1
    %s133 = scalar_select %p130, %s131, %s132
    %p136 = pneg %p130
    %p137 = scmp.eq.s32.totalorder %s11, 1
    %p138 = por %p136, %p137
    %p139 = scmp.ne.s32.totalorder %s131, %s134
    %p140 = scmp.eq.s32.totalorder %s11, 0
    %p141 = por %p139, %p140
    %p142 = scmp.ne.s32.totalorder %s131, %s134
    %p143 = scmp.eq.s32.totalorder %s16, 1
    %p144 = por %p142, %p143
    %p145 = scmp.ne.s32.totalorder %s134, %s135
    %p146 = scmp.eq.s32.totalorder %s16, 0
    %p147 = por %p145, %p146
    %p148 = scmp.ne.s32.totalorder %s134, %s135
    %p149 = scmp.eq.s32.totalorder %s17, 1
    %p150 = por %p148, %p149
    %p152 = scmp.ne.s32.totalorder %s135, %s151
    %p153 = scmp.eq.s32.totalorder %s17, 0
    %p154 = por %p152, %p153
    %p155 = scmp.le.s32.totalorder 1, %s11
    %p156 = scmp.lt.s32.totalorder %s11, 3
    %p157 = pnand %p155, %p156
    %p158 = pneg %p157
    // Predicated region
    $region9: #{bottleneck_forward.1} parent=5 // pred_check
      _
    $region10: #{bottleneck_forward.1} parent=5 // pred_check_branch
      %160 = sbr.rel (%p157) target = $region12
    $region11: #{bottleneck_forward.1} parent=5 // pred_region
      %s161 = ssub.s32 %s11, 1
      // Predicated region
      $region13: #{bottleneck_forward.1} parent=11 // pred_check
        %p162 = pneg %p58
      $region14: #{bottleneck_forward.1} parent=11 // pred_check_branch
        %164 = sbr.rel (%p162) target = $region16
      $region15: #{bottleneck_forward.1} parent=11 // pred_region
        _
      $region16: #{bottleneck_forward.1} parent=11 // pred_fallthru
        _
      // Predicated region
      $region17: #{bottleneck_forward.1} parent=11 // pred_check
        %p165 = pneg %p79
      $region18: #{bottleneck_forward.1} parent=11 // pred_check_branch
        %167 = sbr.rel (%p165) target = $region20
      $region19: #{bottleneck_forward.1} parent=11 // pred_region
        _
      $region20: #{bottleneck_forward.1} parent=11 // pred_fallthru
        _
      // Predicated region
      $region21: #{bottleneck_forward.1} parent=11 // pred_check
        %p168 = pneg %p100
      $region22: #{bottleneck_forward.1} parent=11 // pred_check_branch
        %170 = sbr.rel (%p168) target = $region24
      $region23: #{bottleneck_forward.1} parent=11 // pred_region
        _
      $region24: #{bottleneck_forward.1} parent=11 // pred_fallthru
        _
      // Predicated region
      $region25: #{bottleneck_forward.1} parent=11 // pred_check
        %p171 = pneg %p121
      $region26: #{bottleneck_forward.1} parent=11 // pred_check_branch
        %173 = sbr.rel (%p171) target = $region28
      $region27: #{bottleneck_forward.1} parent=11 // pred_region
        _
      $region28: #{bottleneck_forward.1} parent=11 // pred_fallthru
        _
    $region12: #{bottleneck_forward.1} parent=5 // pred_fallthru
      _
    %p174 = scmp.lt.s32.totalorder %s11, 2
    // Predicated region
    $region29: #{bottleneck_forward.1} parent=5 // pred_check
      %p175 = pneg %p174
    $region30: #{bottleneck_forward.1} parent=5 // pred_check_branch
      %177 = sbr.rel (%p175) target = $region32
    $region31: #{bottleneck_forward.1} parent=5 // pred_region
      // Predicated region
      $region33: #{bottleneck_forward.1} parent=31 // pred_check
        %p178 = pneg %p31
      $region34: #{bottleneck_forward.1} parent=31 // pred_check_branch
        %180 = sbr.rel (%p178) target = $region36
      $region35: #{bottleneck_forward.1} parent=31 // pred_region
        %p181 = scmp.lt.s32.totalorder %s11, 1
        %s182 = scalar_select %p181, %s11, 1
        %s183 = smul.addr %s182, 4
        %s184 = smul.addr %s183, 8
        %s185 = scalar_lea.vmem %s0, %s184
      $region36: #{bottleneck_forward.1} parent=31 // pred_fallthru
        _
    $region32: #{bottleneck_forward.1} parent=5 // pred_fallthru
      _
    %p186 = scmp.le.s32.totalorder 1, %s11
    %p187 = scmp.lt.s32.totalorder %s11, 3
    %p188 = pnand %p186, %p187
    %p189 = pneg %p188
    // Predicated region
    $region37: #{bottleneck_forward.1} parent=5 // pred_check
      _
    $region38: #{bottleneck_forward.1} parent=5 // pred_check_branch
      %191 = sbr.rel (%p188) target = $region40
    $region39: #{bottleneck_forward.1} parent=5 // pred_region
      %s192 = ssub.s32 %s11, 1
      %p193 = scmp.lt.s32.totalorder %s16, 1
      %s194 = scalar_select %p193, %s16, 1
      %s195 = smul.addr %s194, 4
      %s196 = smul.addr %s195, 8
      %s197 = scalar_lea.vmem %s0, %s196
      %p198 = pneg %p37
      %p199 = pneg %p34
      %p200 = pneg %p58
      %p201 = pneg %p55
      %p202 = pneg %p79
      %p203 = pneg %p76
      %p204 = pneg %p100
      %p205 = pneg %p97
      %p206 = pneg %p121
      %p207 = pneg %p118
      %p208 = pneg %p147
      %p209 = pneg %p144
      %p210 = scmp.lt.s32.totalorder %s16, 1
      %s211 = scalar_select %p210, %s16, 1
      %s212 = smul.addr %s211, 4
      %s213 = smul.addr %s212, 8
      %s214 = scalar_lea.vmem %s5, %s213
      %p215 = scmp.lt.s32.totalorder %s16, 1
      %s216 = scalar_select %p215, %s16, 1
      %s217 = smul.addr %s216, 4
      %s218 = smul.addr %s217, 8
      %s219 = scalar_lea.vmem %s0, %s218
      %p220 = scmp.lt.s32.totalorder %s16, 1
      %s221 = scalar_select %p220, %s16, 1
      %s222 = smul.addr %s221, 4
      %s223 = smul.addr %s222, 8
      %s224 = scalar_lea.vmem %s5, %s223
      %v226 = vld [vmem:[%s219] sm:$0xff]
      %v227 = vld [vmem:[%s219 + $0x8] sm:$0xff]
      %v228 = vld [vmem:[%s219 + $0x10] sm:$0xff]
      %v229 = vld [vmem:[%s219 + $0x18] sm:$0xff]
      %v230 = vld [vmem:[%s1] sm:$0x3]
      %v231 = vpack.c.bf16 %v228, %v226
      %v232 = vpack.c.bf16 %v229, %v227
      %vm233 = vcmask 130048
      %v235 = vsel %vm233, %v230, 0
      %237 = vmatpush.bf16.msra.mxu0 0
      %238 = vmatpush.bf16.msra.mxu0 0
      %239 = vmatpush.bf16.msra.mxu0 0
      %240 = vmatpush.bf16.msra.mxu0 0
      %241 = vmatpush.bf16.msra.mxu0 0
      %242 = vmatpush.bf16.msra.mxu0 0
      %243 = vmatpush.bf16.msra.mxu0 0
      %244 = vmatpush.bf16.msra.mxu0 %v231
      %245 = vmatmul.bf16.gmra.mxu0 %v235
      %v246 = vpop.f32.mrf.mxu0
      %v247 = vadd.f32 0.0, %v246
      %v248 = vpop.f32.mrf.mxu0
      %249 = vdwg.mxu0
      %250 = vmatpush.bf16.msra.mxu0 0
      %251 = vmatpush.bf16.msra.mxu0 0
      %252 = vmatpush.bf16.msra.mxu0 0
      %253 = vmatpush.bf16.msra.mxu0 0
      %254 = vmatpush.bf16.msra.mxu0 0
      %255 = vmatpush.bf16.msra.mxu0 0
      %256 = vmatpush.bf16.msra.mxu0 0
      %257 = vmatpush.bf16.msra.mxu0 %v232
      %258 = vmatmul.bf16.gmra.mxu0 %v235
      %v259 = vpop.f32.mrf.mxu0
      %v260 = vadd.f32 0.0, %v259
      %v261 = vpop.f32.mrf.mxu0
      %262 = vdwg.mxu0
      %v263 = vmul.f32 %v247, 0.2
      %v264 = vmul.f32 %v260, 0.2
      %v265 = vmax.f32 %v247, %v263
      %v266 = vmax.f32 %v260, %v264
      %267 = vrot.lane.b32.xlu0 %v265, 17
      %v268 = vpop.permute.xlu0 %267
      %269 = vrot.lane.b32.xlu0 %v266, 17
      %v270 = vpop.permute.xlu0 %269
      %v271 = vlaneseq
      %v272 = vand.u32 %v271, 127
      %vm273 = vcmp.lt.s32.totalorder %v272, 17
      %v274 = vsel %vm273, %v268, %v270
      %v275 = vsel %vm273, %v270, %v268
      %v276 = vld [vmem:[%s4] sm:$0x3]
      %v278 = vperm.slane %v276, 0
      %v279 = vperm.slane %v276, 1
      %v282 = vmul.f32 %v275, %v278
      %v283 = vmul.f32 %v274, %v279
      %v284 = vpack.c.bf16 %v283, %v282
      %285 = vrot.lane.b32.xlu0 %v265, 16
      %v286 = vpop.permute.xlu0 %285
      %287 = vrot.lane.b32.xlu0 %v266, 16
      %v288 = vpop.permute.xlu0 %287
      %vm289 = vcmp.lt.s32.totalorder %v272, 16
      %v290 = vsel %vm289, %v286, %v288
      %v291 = vsel %vm289, %v288, %v286
      %s292 = scalar_lea.vmem %s4, 2
      %v293 = vld [vmem:[%s292] sm:$0x3]
      %v295 = vperm.slane %v293, 0
      %v296 = vperm.slane %v293, 1
      %v299 = vmul.f32 %v291, %v295
      %v300 = vmul.f32 %v290, %v296
      %v301 = vpack.c.bf16 %v300, %v299
      %302 = vrot.lane.b32.xlu0 %v265, 15
      %v303 = vpop.permute.xlu0 %302
      %304 = vrot.lane.b32.xlu0 %v266, 15
      %v305 = vpop.permute.xlu0 %304
      %vm306 = vcmp.lt.s32.totalorder %v272, 15
      %v307 = vsel %vm306, %v303, %v305
      %v308 = vsel %vm306, %v305, %v303
      %s309 = scalar_lea.vmem %s4, 4
      %v310 = vld [vmem:[%s309] sm:$0x3]
      %v312 = vperm.slane %v310, 0
      %v313 = vperm.slane %v310, 1
      %v316 = vmul.f32 %v308, %v312
      %v317 = vmul.f32 %v307, %v313
      %v318 = vpack.c.bf16 %v317, %v316
      %319 = vrot.lane.b32.xlu0 %v265, 1
      %v320 = vpop.permute.xlu0 %319
      %321 = vrot.lane.b32.xlu0 %v266, 1
      %v322 = vpop.permute.xlu0 %321
      %vm323 = vcmp.lt.s32.totalorder %v272, 1
      %v324 = vsel %vm323, %v320, %v322
      %v325 = vsel %vm323, %v322, %v320
      %s326 = scalar_lea.vmem %s4, 6
      %v327 = vld [vmem:[%s326] sm:$0x3]
      %v329 = vperm.slane %v327, 0
      %v330 = vperm.slane %v327, 1
      %v333 = vmul.f32 %v325, %v329
      %v334 = vmul.f32 %v324, %v330
      %v335 = vpack.c.bf16 %v334, %v333
      %v336 = vpack.c.bf16 %v266, %v265
      %337 = vrot.lane.b32.xlu0 %v265, 127
      %v338 = vpop.permute.xlu0 %337
      %339 = vrot.lane.b32.xlu0 %v266, 127
      %v340 = vpop.permute.xlu0 %339
      %vm341 = vcmp.lt.s32.totalorder %v272, 127
      %v342 = vsel %vm341, %v338, %v340
      %v343 = vsel %vm341, %v340, %v338
      %s344 = scalar_lea.vmem %s4, 10
      %v345 = vld [vmem:[%s344] sm:$0x3]
      %v347 = vperm.slane %v345, 0
      %v348 = vperm.slane %v345, 1
      %v351 = vmul.f32 %v342, %v347
      %v352 = vmul.f32 %v343, %v348
      %v353 = vpack.c.bf16 %v352, %v351
      %354 = vrot.lane.b32.xlu0 %v265, 113
      %v355 = vpop.permute.xlu0 %354
      %356 = vrot.lane.b32.xlu0 %v266, 113
      %v357 = vpop.permute.xlu0 %356
      %vm358 = vcmp.lt.s32.totalorder %v272, 113
      %v359 = vsel %vm358, %v355, %v357
      %v360 = vsel %vm358, %v357, %v355
      %s361 = scalar_lea.vmem %s4, 12
      %v362 = vld [vmem:[%s361] sm:$0x3]
      %v364 = vperm.slane %v362, 0
      %v365 = vperm.slane %v362, 1
      %v368 = vmul.f32 %v359, %v364
      %v369 = vmul.f32 %v360, %v365
      %v370 = vpack.c.bf16 %v369, %v368
      %371 = vrot.lane.b32.xlu0 %v265, 112
      %v372 = vpop.permute.xlu0 %371
      %373 = vrot.lane.b32.xlu0 %v266, 112
      %v374 = vpop.permute.xlu0 %373
      %vm375 = vcmp.lt.s32.totalorder %v272, 112
      %v376 = vsel %vm375, %v372, %v374
      %v377 = vsel %vm375, %v374, %v372
      %s378 = scalar_lea.vmem %s4, 14
      %v379 = vld [vmem:[%s378] sm:$0x3]
      %v381 = vperm.slane %v379, 0
      %v382 = vperm.slane %v379, 1
      %v385 = vmul.f32 %v376, %v381
      %v386 = vmul.f32 %v377, %v382
      %v387 = vpack.c.bf16 %v386, %v385
      %388 = vrot.lane.b32.xlu0 %v265, 111
      %v389 = vpop.permute.xlu0 %388
      %390 = vrot.lane.b32.xlu0 %v266, 111
      %v391 = vpop.permute.xlu0 %390
      %vm392 = vcmp.lt.s32.totalorder %v272, 111
      %v393 = vsel %vm392, %v389, %v391
      %v394 = vsel %vm392, %v391, %v389
      %s395 = scalar_lea.vmem %s4, 16
      %v396 = vld [vmem:[%s395] sm:$0x3]
      %v398 = vperm.slane %v396, 0
      %v399 = vperm.slane %v396, 1
      %v402 = vmul.f32 %v393, %v398
      %v403 = vmul.f32 %v394, %v399
      %v404 = vpack.c.bf16 %v403, %v402
      %v406 = vunpack.c.l.b16 %v284
      %v407 = vunpack.c.h.b16 %v284
      %v408 = vpack.c.b16 %v406, %v406
      %v409 = vpack.c.b16 %v407, %v407
      %v411 = vunpack.c.l.b16 %v301
      %v412 = vunpack.c.h.b16 %v301
      %v413 = vpack.c.b16 %v411, %v411
      %v414 = vpack.c.b16 %v412, %v412
      %v415 = vrot.slane %v413, 6
      %v416 = vrot.slane %v414, 6
      %v418 = vunpack.c.l.b16 %v318
      %v419 = vunpack.c.h.b16 %v318
      %v420 = vpack.c.b16 %v418, %v418
      %v421 = vpack.c.b16 %v419, %v419
      %v423 = vunpack.c.l.b16 %v335
      %v424 = vunpack.c.h.b16 %v335
      %v425 = vpack.c.b16 %v423, %v423
      %v426 = vpack.c.b16 %v424, %v424
      %v427 = vrot.slane %v425, 2
      %v428 = vrot.slane %v426, 2
      %v430 = vunpack.c.l.b16 %v336
      %v431 = vunpack.c.h.b16 %v336
      %v432 = vpack.c.b16 %v430, %v430
      %v433 = vpack.c.b16 %v431, %v431
      %v435 = vunpack.c.l.b16 %v353
      %v436 = vunpack.c.h.b16 %v353
      %v437 = vpack.c.b16 %v435, %v435
      %v438 = vpack.c.b16 %v436, %v436
      %v439 = vrot.slane %v437, 6
      %v440 = vrot.slane %v438, 6
      %v442 = vunpack.c.l.b16 %v370
      %v443 = vunpack.c.h.b16 %v370
      %v444 = vpack.c.b16 %v442, %v442
      %v445 = vpack.c.b16 %v443, %v443
      %v447 = vunpack.c.l.b16 %v387
      %v448 = vunpack.c.h.b16 %v387
      %v449 = vpack.c.b16 %v447, %v447
      %v450 = vpack.c.b16 %v448, %v448
      %v451 = vrot.slane %v449, 2
      %v452 = vrot.slane %v450, 2
      %v454 = vunpack.c.l.b16 %v404
      %v455 = vunpack.c.h.b16 %v404
      %v456 = vpack.c.b16 %v454, %v454
      %v457 = vpack.c.b16 %v455, %v455
      %vm458 = vcmask 1041408
      %v461 = vsel %vm458, %v408, %v415
      %v464 = vsel %vm458, %v409, %v416
      %vm465 = vcmask 1043456
      %v467 = vsel %vm465, %v461, %v420
      %v469 = vsel %vm465, %v464, %v421
      %vm470 = vcmask 1045504
      %v472 = vsel %vm470, %v467, %v427
      %v475 = vsel %vm470, %v469, %v428
      %v479 = vsel %vm458, %v432, %v439
      %v482 = vsel %vm458, %v433, %v440
      %v484 = vsel %vm465, %v479, %v444
      %v486 = vsel %vm465, %v482, %v445
      %v488 = vsel %vm470, %v484, %v451
      %v491 = vsel %vm470, %v486, %v452
      %v493 = vld [vmem:[%s2] sm:$0x3]
      %vm494 = vcmask 293888
      %v496 = vsel %vm494, %v493, 0
      %v499 = vsel %vm458, %v456, 0
      %v502 = vsel %vm458, %v457, 0
      %504 = vmatpush.bf16.msra.mxu0 0
      %505 = vmatpush.bf16.msra.mxu0 0
      %506 = vmatpush.bf16.msra.mxu0 0
      %507 = vmatpush.bf16.msra.mxu0 0
      %508 = vmatpush.bf16.msra.mxu0 0
      %509 = vmatpush.bf16.msra.mxu0 %v499
      %510 = vmatpush.bf16.msra.mxu0 %v488
      %511 = vmatpush.bf16.msra.mxu0 %v472
      %512 = vmatmul.bf16.gmra.mxu0 %v496
      %v513 = vpop.f32.mrf.mxu0
      %v514 = vadd.f32 0.0, %v513
      %v515 = vpop.f32.mrf.mxu0
      %516 = vdwg.mxu0
      %517 = vmatpush.bf16.msra.mxu0 0
      %518 = vmatpush.bf16.msra.mxu0 0
      %519 = vmatpush.bf16.msra.mxu0 0
      %520 = vmatpush.bf16.msra.mxu0 0
      %521 = vmatpush.bf16.msra.mxu0 0
      %522 = vmatpush.bf16.msra.mxu0 %v502
      %523 = vmatpush.bf16.msra.mxu0 %v491
      %524 = vmatpush.bf16.msra.mxu0 %v475
      %525 = vmatmul.bf16.gmra.mxu0 %v496
      %v526 = vpop.f32.mrf.mxu0
      %v527 = vadd.f32 0.0, %v526
      %v528 = vpop.f32.mrf.mxu0
      %529 = vdwg.mxu0
      %v530 = vmul.f32 %v514, 0.2
      %v531 = vmul.f32 %v527, 0.2
      %v532 = vmax.f32 %v514, %v530
      %v533 = vmax.f32 %v527, %v531
      %v534 = vld [vmem:[%s3] sm:$0xf]
      %v535 = vld [vmem:[%s3 + $0x4] sm:$0xf]
      %v536 = vpack.c.bf16 %v532, %v532
      %v537 = vpack.c.bf16 %v533, %v533
      %v540 = vunpack.c.l.b16 %v534
      %v541 = vunpack.c.l.b16 %v535
      %v542 = vpack.c.b16 %v541, %v540
      %vm543 = vcmask 31744
      %v545 = vsel %vm543, %v542, 0
      %v548 = vsel %vm458, %v536, 0
      %v551 = vsel %vm458, %v537, 0
      %553 = vmatpush.bf16.msra.mxu0 0
      %554 = vmatpush.bf16.msra.mxu0 0
      %555 = vmatpush.bf16.msra.mxu0 0
      %556 = vmatpush.bf16.msra.mxu0 0
      %557 = vmatpush.bf16.msra.mxu0 0
      %558 = vmatpush.bf16.msra.mxu0 0
      %559 = vmatpush.bf16.msra.mxu0 0
      %560 = vmatpush.bf16.msra.mxu0 %v548
      %561 = vmatmul.bf16.gmra.mxu0 %v545
      %v562 = vpop.f32.mrf.mxu0
      %v563 = vadd.f32 %v226, %v562
      %v564 = vpop.f32.mrf.mxu0
      %v565 = vadd.f32 %v228, %v564
      %566 = vdwg.mxu0
      %567 = vmatpush.bf16.msra.mxu0 0
      %568 = vmatpush.bf16.msra.mxu0 0
      %569 = vmatpush.bf16.msra.mxu0 0
      %570 = vmatpush.bf16.msra.mxu0 0
      %571 = vmatpush.bf16.msra.mxu0 0
      %572 = vmatpush.bf16.msra.mxu0 0
      %573 = vmatpush.bf16.msra.mxu0 0
      %574 = vmatpush.bf16.msra.mxu0 %v551
      %575 = vmatmul.bf16.gmra.mxu0 %v545
      %v576 = vpop.f32.mrf.mxu0
      %v577 = vadd.f32 %v227, %v576
      %v578 = vpop.f32.mrf.mxu0
      %v579 = vadd.f32 %v229, %v578
      %580 = vdwg.mxu0
      %v581 = vmul.f32 %v563, 0.2
      %v582 = vmul.f32 %v577, 0.2
      %v583 = vmul.f32 %v565, 0.2
      %v584 = vmul.f32 %v579, 0.2
      %v585 = vmax.f32 %v563, %v581
      %v586 = vmax.f32 %v577, %v582
      %v587 = vmax.f32 %v565, %v583
      %v588 = vmax.f32 %v579, %v584
      %589 = vst [vmem:[%s224] sm:$0xff] %v585
      %590 = vst [vmem:[%s224 + $0x8] sm:$0xff] %v586
      %591 = vst [vmem:[%s224 + $0x10] sm:$0xff] %v587
      %592 = vst [vmem:[%s224 + $0x18] sm:$0xff] %v588
      %p593 = scmp.lt.s32.totalorder %s16, 1
      %s594 = scalar_select %p593, %s16, 1
      %s595 = smul.addr %s594, 4
      %s596 = smul.addr %s595, 8
      %s597 = scalar_lea.vmem %s5, %s596
      // Predicated region
      $region41: #{bottleneck_forward.1} parent=39 // pred_check
        %p598 = pneg %p144
      $region42: #{bottleneck_forward.1} parent=39 // pred_check_branch
        %600 = sbr.rel (%p598) target = $region44
      $region43: #{bottleneck_forward.1} parent=39 // pred_region
        _
      $region44: #{bottleneck_forward.1} parent=39 // pred_fallthru
        _
    $region40: #{bottleneck_forward.1} parent=5 // pred_fallthru
      _
    %p601 = scmp.le.s32.totalorder 2, %s11
    // Predicated region
    $region45: #{bottleneck_forward.1} parent=5 // pred_check
      %p602 = pneg %p601
    $region46: #{bottleneck_forward.1} parent=5 // pred_check_branch
      %604 = sbr.rel (%p602) target = $region48
    $region47: #{bottleneck_forward.1} parent=5 // pred_region
      %s605 = ssub.s32 %s11, 2
      // Predicated region
      $region49: #{bottleneck_forward.1} parent=47 // pred_check
        %p606 = pneg %p150
      $region50: #{bottleneck_forward.1} parent=47 // pred_check_branch
        %608 = sbr.rel (%p606) target = $region52
      $region51: #{bottleneck_forward.1} parent=47 // pred_region
        %p609 = scmp.lt.s32.totalorder %s17, 1
        %s610 = scalar_select %p609, %s17, 1
        %s611 = smul.addr %s610, 4
        %s612 = smul.addr %s611, 8
        %s613 = scalar_lea.vmem %s5, %s612
      $region52: #{bottleneck_forward.1} parent=47 // pred_fallthru
        _
    $region48: #{bottleneck_forward.1} parent=5 // pred_fallthru
      _
  $region6: #{bottleneck_forward.1} parent=0 // loop_footer
    %s15 = sadd.s32 1, %s11
  $region7: #{bottleneck_forward.1} parent=0 // loop_footer_branch
    %10 = sbr.rel target = $region3
  $region8: #{bottleneck_forward.1} parent=0 // loop_exit
    _

</llo_original>
